<compile_context>
chip_gen: v7x
topology: tpu7x:2x2x1
jax: 0.10.0
libtpu: 0.0.40
codegen_flags: <defaults>
</compile_context>

<pallas_src>
import functools

import jax
import jax.numpy as jnp
from jax.experimental import pallas as pl
from jax.experimental.pallas import tpu as pltpu


def _round_up(x, m):
    return ((x + m - 1) // m) * m


def block_kernel(x_ref, w_ref, b_ref, o_ref, *, kernel_s, l_out):
    # x_ref: (TB*ML_pad, emb)        bf16  position-padded rows, batch-flattened
    # w_ref: (kernel_s, emb, H_pad)  bf16  per-tap matmul weights
    # b_ref: (1, H_pad)              f32   conv bias (zero-padded)
    # o_ref: (TB, H_pad)             f32   max-pooled ReLU'd conv output
    m_rows = x_ref.shape[0]
    tb, h_pad = o_ref.shape
    ml_pad = m_rows // tb

    xf = x_ref[...]                                            # (M, emb) bf16

    acc = None
    for j in range(kernel_s):                                  # unrolled (static, small)
        # bf16 MXU pass for tap j over every position row, f32 accumulation.
        sj = jnp.dot(xf, w_ref[j], preferred_element_type=jnp.float32)  # (M, H_pad)
        # Aligned split: ML_pad % 16 == 0, H_pad % 128 == 0 -> layout-preserving.
        sj3 = sj.reshape(tb, ml_pad, h_pad)                    # (TB, ML_pad, H_pad)
        # Tap j contributes sj3[:, t+j, :] to window start t; only t < L_out valid.
        win = sj3[:, j:j + l_out, :]                           # (TB, L_out, H_pad)
        acc = win if acc is None else acc + win

    # Max over positions, then bias + ReLU (exact: bias is constant over
    # positions and ReLU is monotone).
    m = jnp.max(acc, axis=1)                                   # (TB, H_pad)
    o_ref[...] = jnp.maximum(m + b_ref[...], 0.0).astype(o_ref.dtype)


def block_forward(batch_emb, weight, bias, kernel_s, *,
                  vmem_budget_bytes=8 << 20, max_m_rows=8192):
    """batch_emb: (B, 1, max_len, emb) f32; weight: (H, 1, kernel_s, emb); bias: (H,)."""
    B, _, max_len, emb = batch_emb.shape
    H = weight.shape[0]
    L_out = max_len - kernel_s + 1
    assert L_out >= 1, "max_len must be >= kernel_s"

    ML_pad = _round_up(max_len, 16)     # bf16 sublane packing for the flattened M rows
    H_pad = _round_up(H, 128)           # lane-dense MXU N / unmasked vst

    # ---- tile sizing from a VMEM byte budget (bigger tiles, budgeted TB) ----
    live = kernel_s + 1                                    # live f32 (M, H_pad) slabs per step
    bytes_per_row = live * H_pad * 4 + 2 * emb * 2         # + double-buffered bf16 x row
    m_rows = max(ML_pad, min(max_m_rows, vmem_budget_bytes // bytes_per_row))
    TB = max(8, ((m_rows // ML_pad) // 8) * 8)             # multiple of 8 (f32 output block)

    B8 = _round_up(B, 8)
    TB = min(TB, B8)
    if TB >= B8 and B8 >= 16:
        # Keep >= 2 grid tiles so v7x's second TensorCore gets work (no-op on v5e/v6e).
        TB = _round_up(pl.cdiv(B8, 2), 8)
    B_pad = pl.cdiv(B, TB) * TB
    n_tiles = B_pad // TB

    # ---- operand prep: bf16 streams, position padding, batch-flattened M ----
    x = batch_emb[:, 0]                                             # (B, max_len, emb)
    x = jnp.pad(x, ((0, B_pad - B), (0, ML_pad - max_len), (0, 0)))
    x_flat = x.astype(jnp.bfloat16).reshape(B_pad * ML_pad, emb)

    # Conv weight -> per-tap matmul weights: w[j, e, h] = weight[h, 0, j, e].
    w = jnp.transpose(weight[:, 0, :, :], (1, 2, 0))                # (kernel_s, emb, H)
    w = jnp.pad(w, ((0, 0), (0, 0), (0, H_pad - H))).astype(jnp.bfloat16)
    b2 = jnp.pad(bias.astype(jnp.float32).reshape(1, H), ((0, 0), (0, H_pad - H)))

    flops = 2 * B_pad * ML_pad * emb * H_pad * kernel_s
    bytes_accessed = x_flat.size * 2 + w.size * 2 + b2.size * 4 + B_pad * H_pad * 4

    kernel = functools.partial(block_kernel, kernel_s=kernel_s, l_out=L_out)

    grid_spec = pltpu.PrefetchScalarGridSpec(
        num_scalar_prefetch=0,
        grid=(n_tiles,),
        in_specs=[
            pl.BlockSpec((TB * ML_pad, emb), lambda i: (i, 0)),
            pl.BlockSpec((kernel_s, emb, H_pad), lambda i: (0, 0, 0)),
            pl.BlockSpec((1, H_pad), lambda i: (0, 0)),
        ],
        out_specs=pl.BlockSpec((TB, H_pad), lambda i: (i, 0)),
    )

    out = pl.pallas_call(
        kernel,
        out_shape=jax.ShapeDtypeStruct((B_pad, H_pad), jnp.float32),
        grid_spec=grid_spec,
        compiler_params=pltpu.CompilerParams(
            dimension_semantics=("parallel",),
            vmem_limit_bytes=32 * 1024 * 1024),
        cost_estimate=pl.CostEstimate(flops=flops, transcendentals=0,
                                      bytes_accessed=bytes_accessed),
    )(x_flat, w, b2)

    # Strip batch / lane padding.
    return out[:B, :H]


if __name__ == "__main__":
    # Small shapes consistent with the module's forward.
    B, max_len, emb = 2, 16, 32
    kernel_s, hidden_num = 3, 32

    key = jax.random.PRNGKey(0)
    k_x, k_w, k_b = jax.random.split(key, 3)

    batch_emb = jax.random.normal(k_x, (B, 1, max_len, emb), dtype=jnp.float32)
    weight = jax.random.normal(k_w, (hidden_num, 1, kernel_s, emb), dtype=jnp.float32) * 0.05
    bias = jax.random.normal(k_b, (hidden_num,), dtype=jnp.float32) * 0.05

    fwd = jax.jit(lambda xe, w, b: block_forward(xe, w, b, kernel_s))
    out = jax.block_until_ready(fwd(batch_emb, weight, bias))

    # Reference in plain JAX (f32 im2col conv + bias + relu + max over positions).
    L_out = max_len - kernel_s + 1
    idx = jnp.arange(L_out)[:, None] + jnp.arange(kernel_s)[None, :]
    x_unf = batch_emb[:, 0][:, idx, :].reshape(B, L_out, kernel_s * emb)
    ref = jnp.max(
        jnp.maximum(
            jnp.einsum("blk,hk->blh", x_unf, weight.reshape(hidden_num, -1)) + bias, 0.0),
        axis=1,
    )

    assert out.shape == (B, hidden_num)
    # bf16 input/weight streams (f32 accumulation) -> loosened tolerance vs f32 reference.
    assert jnp.allclose(out, ref, atol=2e-2, rtol=2e-2), float(jnp.max(jnp.abs(out - ref)))

    print("KERNEL_OK")
</pallas_src>

<mosaic_0001>
module attributes {stable_mosaic.version = 11 : i64} {
  func.func @block_kernel(%arg0: i32, %arg1: memref<128x32xbf16, #tpu.memory_space<vmem>>, %arg2: memref<3x32x128xbf16, #tpu.memory_space<vmem>>, %arg3: memref<1x128xf32, #tpu.memory_space<vmem>>, %arg4: memref<8x128xf32, #tpu.memory_space<vmem>>) attributes {dimension_semantics = [#tpu.dimension_semantics<parallel>], iteration_bounds = array<i64: 1>, scalar_prefetch = 0 : i64, scratch_operands = 0 : i64, tpu.core_type = #tpu.core_type<tc>, window_params = [{transform_indices = @transform_0, window_bounds = array<i64: 128, 32>}, {pipeline_mode = #tpu.pipeline_mode<synchronous>, transform_indices = @transform_1, window_bounds = array<i64: 3, 32, 128>}, {pipeline_mode = #tpu.pipeline_mode<synchronous>, transform_indices = @transform_2, window_bounds = array<i64: 1, 128>}, {transform_indices = @transform_3, window_bounds = array<i64: 8, 128>}]} {
    %c0 = arith.constant 0 : index
    %c0_0 = arith.constant 0 : index
    %0 = vector.load %arg1[%c0, %c0_0] : memref<128x32xbf16, #tpu.memory_space<vmem>>, vector<128x32xbf16>
    %c0_1 = arith.constant 0 : index
    %c0_2 = arith.constant 0 : index
    %c0_3 = arith.constant 0 : index
    %1 = vector.load %arg2[%c0_1, %c0_2, %c0_3] : memref<3x32x128xbf16, #tpu.memory_space<vmem>>, vector<1x32x128xbf16>
    %2 = vector.shape_cast %1 : vector<1x32x128xbf16> to vector<32x128xbf16>
    %cst = arith.constant dense<0.000000e+00> : vector<128x128xf32>
    %3 = tpu.matmul %0, %2, %cst {dimension_numbers = #tpu.dot_dimension_numbers<[1], [0], [0], [1], [0, 0, 1, 1], [], []>} : vector<128x32xbf16>, vector<32x128xbf16>, vector<128x128xf32> -> vector<128x128xf32>
    %4 = vector.shape_cast %3 : vector<128x128xf32> to vector<8x16x128xf32>
    %5 = vector.extract_strided_slice %4 {offsets = [0, 0, 0], sizes = [8, 14, 128], strides = [1, 1, 1]} : vector<8x16x128xf32> to vector<8x14x128xf32>
    %c1 = arith.constant 1 : index
    %c0_4 = arith.constant 0 : index
    %c0_5 = arith.constant 0 : index
    %6 = vector.load %arg2[%c1, %c0_4, %c0_5] : memref<3x32x128xbf16, #tpu.memory_space<vmem>>, vector<1x32x128xbf16>
    %7 = vector.shape_cast %6 : vector<1x32x128xbf16> to vector<32x128xbf16>
    %cst_6 = arith.constant dense<0.000000e+00> : vector<128x128xf32>
    %8 = tpu.matmul %0, %7, %cst_6 {dimension_numbers = #tpu.dot_dimension_numbers<[1], [0], [0], [1], [0, 0, 1, 1], [], []>} : vector<128x32xbf16>, vector<32x128xbf16>, vector<128x128xf32> -> vector<128x128xf32>
    %9 = vector.shape_cast %8 : vector<128x128xf32> to vector<8x16x128xf32>
    %10 = vector.extract_strided_slice %9 {offsets = [0, 1, 0], sizes = [8, 14, 128], strides = [1, 1, 1]} : vector<8x16x128xf32> to vector<8x14x128xf32>
    %11 = arith.addf %5, %10 : vector<8x14x128xf32>
    %c2 = arith.constant 2 : index
    %c0_7 = arith.constant 0 : index
    %c0_8 = arith.constant 0 : index
    %12 = vector.load %arg2[%c2, %c0_7, %c0_8] : memref<3x32x128xbf16, #tpu.memory_space<vmem>>, vector<1x32x128xbf16>
    %13 = vector.shape_cast %12 : vector<1x32x128xbf16> to vector<32x128xbf16>
    %cst_9 = arith.constant dense<0.000000e+00> : vector<128x128xf32>
    %14 = tpu.matmul %0, %13, %cst_9 {dimension_numbers = #tpu.dot_dimension_numbers<[1], [0], [0], [1], [0, 0, 1, 1], [], []>} : vector<128x32xbf16>, vector<32x128xbf16>, vector<128x128xf32> -> vector<128x128xf32>
    %15 = vector.shape_cast %14 : vector<128x128xf32> to vector<8x16x128xf32>
    %16 = vector.extract_strided_slice %15 {offsets = [0, 2, 0], sizes = [8, 14, 128], strides = [1, 1, 1]} : vector<8x16x128xf32> to vector<8x14x128xf32>
    %17 = arith.addf %11, %16 : vector<8x14x128xf32>
    %cst_10 = arith.constant dense<0xFF800000> : vector<8x128xf32>
    %18 = vector.multi_reduction <maximumf>, %17, %cst_10 [1] : vector<8x14x128xf32> to vector<8x128xf32>
    %c0_11 = arith.constant 0 : index
    %c0_12 = arith.constant 0 : index
    %19 = vector.load %arg3[%c0_11, %c0_12] : memref<1x128xf32, #tpu.memory_space<vmem>>, vector<1x128xf32>
    %20 = vector.broadcast %19 : vector<1x128xf32> to vector<8x128xf32>
    %21 = arith.addf %18, %20 : vector<8x128xf32>
    %cst_13 = arith.constant 0.000000e+00 : f32
    %22 = vector.broadcast %cst_13 : f32 to vector<8x128xf32>
    %23 = arith.maximumf %21, %22 : vector<8x128xf32>
    %c0_14 = arith.constant 0 : index
    %c0_15 = arith.constant 0 : index
    %24 = vector.load %arg4[%c0_14, %c0_15] : memref<8x128xf32, #tpu.memory_space<vmem>>, vector<8x128xf32>
    tpu.vector_store %arg4[%c0_14, %c0_15], %23 {strides = array<i32>} : memref<8x128xf32, #tpu.memory_space<vmem>>, vector<8x128xf32>,
    return
  }
  func.func @transform_0(%arg0: i32) -> (i32, i32) {
    %c0_i32 = arith.constant 0 : i32
    %c0_i32_0 = arith.constant 0 : i32
    return %arg0, %c0_i32 : i32, i32
  }
  func.func @transform_1(%arg0: i32) -> (i32, i32, i32) {
    %c0_i32 = arith.constant 0 : i32
    %c0_i32_0 = arith.constant 0 : i32
    %c0_i32_1 = arith.constant 0 : i32
    %c0_i32_2 = arith.constant 0 : i32
    return %c0_i32, %c0_i32_0, %c0_i32_1 : i32, i32, i32
  }
  func.func @transform_2(%arg0: i32) -> (i32, i32) {
    %c0_i32 = arith.constant 0 : i32
    %c0_i32_0 = arith.constant 0 : i32
    %c0_i32_1 = arith.constant 0 : i32
    return %c0_i32, %c0_i32_0 : i32, i32
  }
  func.func @transform_3(%arg0: i32) -> (i32, i32) {
    %c0_i32 = arith.constant 0 : i32
    %c0_i32_0 = arith.constant 0 : i32
    return %arg0, %c0_i32 : i32, i32
  }
}

</mosaic_0001>

<llo_original>
// kernel: _lambda_.1
$region0: #{_lambda_.1}
  #allocation0 [shape = 'u32[]', space=smem, size = 0x4, offset = 0x4, fixed_abs, tag = 'smem constant byte address 0x4 - core index']
  #allocation1 [shape = 'u32[144,128]{1,0:T(1,128)}', space=vmem, size = 0x12000, scoped, tag = 'internal scratch']
  %s0 = inlined_call_operand.vmem [shape: bf16[128,32], index: 0, kind: input, shape index: {}]
  %s1 = inlined_call_operand.vmem [shape: bf16[3,32,128], index: 1, kind: input, shape index: {}]
  %s2 = inlined_call_operand.vmem [shape: f32[1,128], index: 2, kind: input, shape index: {}]
  %s3 = inlined_call_operand.vmem [shape: f32[8,128], index: 3, kind: output, shape index: {}]
  %s4 = sld [smem:[#allocation0]]
  $region22: #{_lambda_.1} parent=0
    _
  %s6 = ssub.s32 1, %s4
  %s7 = scalar_select 0, %s6, %s4
  // Predicated region
  $region2: #{_lambda_.1} parent=0 // pred_check
    _
  $region3: #{_lambda_.1} parent=0 // pred_check_branch
    %9 = sbr.rel (0) target = $region5
  $region4: #{_lambda_.1} parent=0 // pred_region
    _
  $region5: #{_lambda_.1} parent=0 // pred_fallthru
    _
  // Predicated region
  $region6: #{_lambda_.1} parent=0 // pred_check
    _
  $region7: #{_lambda_.1} parent=0 // pred_check_branch
    %11 = sbr.rel (0) target = $region9
  $region8: #{_lambda_.1} parent=0 // pred_region
    _
  $region9: #{_lambda_.1} parent=0 // pred_fallthru
    _
  // Predicated region
  $region10: #{_lambda_.1} parent=0 // pred_check
    _
  $region11: #{_lambda_.1} parent=0 // pred_check_branch
    %13 = sbr.rel (0) target = $region13
  $region12: #{_lambda_.1} parent=0 // pred_region
    _
  $region13: #{_lambda_.1} parent=0 // pred_fallthru
    _
  %v15 = vld [vmem:[%s0] sm:$0xf]
  %v16 = vld [vmem:[%s0 + $0x4] sm:$0xf]
  %v17 = vld [vmem:[%s0 + $0x8] sm:$0xf]
  %v18 = vld [vmem:[%s0 + $0xc] sm:$0xf]
  %v19 = vld [vmem:[%s0 + $0x10] sm:$0xf]
  %v20 = vld [vmem:[%s0 + $0x14] sm:$0xf]
  %v21 = vld [vmem:[%s0 + $0x18] sm:$0xf]
  %v22 = vld [vmem:[%s0 + $0x1c] sm:$0xf]
  %v23 = vld [vmem:[%s0 + $0x20] sm:$0xf]
  %v24 = vld [vmem:[%s0 + $0x24] sm:$0xf]
  %v25 = vld [vmem:[%s0 + $0x28] sm:$0xf]
  %v26 = vld [vmem:[%s0 + $0x2c] sm:$0xf]
  %v27 = vld [vmem:[%s0 + $0x30] sm:$0xf]
  %v28 = vld [vmem:[%s0 + $0x34] sm:$0xf]
  %v29 = vld [vmem:[%s0 + $0x38] sm:$0xf]
  %v30 = vld [vmem:[%s0 + $0x3c] sm:$0xf]
  %v31 = vld [vmem:[%s1] sm:$0xf]
  %v32 = vld [vmem:[%s1 + $0x4] sm:$0xf]
  %v33 = vld [vmem:[%s1 + $0x8] sm:$0xf]
  %v34 = vld [vmem:[%s1 + $0xc] sm:$0xf]
  %v51 = vunpack.c.l.b16 %v15
  %v52 = vunpack.c.l.b16 %v16
  %v53 = vunpack.c.l.b16 %v17
  %v54 = vunpack.c.l.b16 %v18
  %v55 = vunpack.c.l.b16 %v19
  %v56 = vunpack.c.l.b16 %v20
  %v57 = vunpack.c.l.b16 %v21
  %v58 = vunpack.c.l.b16 %v22
  %v59 = vunpack.c.l.b16 %v23
  %v60 = vunpack.c.l.b16 %v24
  %v61 = vunpack.c.l.b16 %v25
  %v62 = vunpack.c.l.b16 %v26
  %v63 = vunpack.c.l.b16 %v27
  %v64 = vunpack.c.l.b16 %v28
  %v65 = vunpack.c.l.b16 %v29
  %v66 = vunpack.c.l.b16 %v30
  %v67 = vpack.c.b16 %v52, %v51
  %v68 = vpack.c.b16 %v54, %v53
  %v69 = vpack.c.b16 %v56, %v55
  %v70 = vpack.c.b16 %v58, %v57
  %v71 = vpack.c.b16 %v60, %v59
  %v72 = vpack.c.b16 %v62, %v61
  %v73 = vpack.c.b16 %v64, %v63
  %v74 = vpack.c.b16 %v66, %v65
  %v79 = vunpack.c.l.b16 %v31
  %v80 = vunpack.c.l.b16 %v32
  %v81 = vunpack.c.l.b16 %v33
  %v82 = vunpack.c.l.b16 %v34
  %v83 = vpack.c.b16 %v80, %v79
  %v84 = vpack.c.b16 %v82, %v81
  %vm87 = vcmask 261120
  %v89 = vsel %vm87, %v67, 0
  %v92 = vsel %vm87, %v68, 0
  %v95 = vsel %vm87, %v69, 0
  %v98 = vsel %vm87, %v70, 0
  %v101 = vsel %vm87, %v71, 0
  %v104 = vsel %vm87, %v72, 0
  %v107 = vsel %vm87, %v73, 0
  %v110 = vsel %vm87, %v74, 0
  %112 = vmatprep.subr.bf16.mxu0 0
  %113 = vmatpush1.bf16.msra.mxu0 %v83
  %114 = vmatprep.subr.bf16.mxu0 0
  %115 = vmatpush1.bf16.msra.mxu0 %v84
  %116 = vmatprep.subr.bf16.mxu0 0
  %117 = vmatpush1.bf16.msra.mxu0 0
  %118 = vmatprep.subr.bf16.mxu0 0
  %119 = vmatpush1.bf16.msra.mxu0 0
  %120 = vmatprep.subr.bf16.mxu0 0
  %121 = vmatpush1.bf16.msra.mxu0 0
  %122 = vmatprep.subr.bf16.mxu0 0
  %123 = vmatpush1.bf16.msra.mxu0 0
  %124 = vmatprep.subr.bf16.mxu0 0
  %125 = vmatpush1.bf16.msra.mxu0 0
  %126 = vmatprep.subr.bf16.mxu0 0
  %127 = vmatpush1.bf16.msra.mxu0 0
  %128 = vmatprep.subr.bf16.mxu0 0
  %129 = vmatpush1.bf16.msra.mxu0 0
  %130 = vmatprep.subr.bf16.mxu0 0
  %131 = vmatpush1.bf16.msra.mxu0 0
  %132 = vmatprep.subr.bf16.mxu0 0
  %133 = vmatpush1.bf16.msra.mxu0 0
  %134 = vmatprep.subr.bf16.mxu0 0
  %135 = vmatpush1.bf16.msra.mxu0 0
  %136 = vmatprep.subr.bf16.mxu0 0
  %137 = vmatpush1.bf16.msra.mxu0 0
  %138 = vmatprep.subr.bf16.mxu0 0
  %139 = vmatpush1.bf16.msra.mxu0 0
  %140 = vmatprep.subr.bf16.mxu0 0
  %141 = vmatpush1.bf16.msra.mxu0 0
  %142 = vmatprep.subr.bf16.mxu0 0
  %143 = vmatpush1.bf16.msra.mxu0 0
  %144 = vmatprep.mubr.bf16.mxu0 0
  %145 = vmatmul.mubr.bf16.gmra.mrb[0].mxu0 %v89
  %v146 = vpop.f32.mrb[0].mxu0
  %v147 = vadd.f32 0.0, %v146
  %v148 = vpop.f32.mrb[0].mxu0
  %v149 = vpop.f32.mrb[0].mxu0
  %v150 = vadd.f32 0.0, %v149
  %v151 = vpop.f32.mrb[0].mxu0
  %152 = vmatprep.mubr.bf16.mxu0 0
  %153 = vmatmul.mubr.bf16.gmra.mrb[0].mxu0 %v92
  %v154 = vpop.f32.mrb[0].mxu0
  %v155 = vadd.f32 0.0, %v154
  %v156 = vpop.f32.mrb[0].mxu0
  %v157 = vpop.f32.mrb[0].mxu0
  %v158 = vadd.f32 0.0, %v157
  %v159 = vpop.f32.mrb[0].mxu0
  %160 = vmatprep.mubr.bf16.mxu0 0
  %161 = vmatmul.mubr.bf16.gmra.mrb[0].mxu0 %v95
  %v162 = vpop.f32.mrb[0].mxu0
  %v163 = vadd.f32 0.0, %v162
  %v164 = vpop.f32.mrb[0].mxu0
  %v165 = vpop.f32.mrb[0].mxu0
  %v166 = vadd.f32 0.0, %v165
  %v167 = vpop.f32.mrb[0].mxu0
  %168 = vmatprep.mubr.bf16.mxu0 0
  %169 = vmatmul.mubr.bf16.gmra.mrb[0].mxu0 %v98
  %v170 = vpop.f32.mrb[0].mxu0
  %v171 = vadd.f32 0.0, %v170
  %v172 = vpop.f32.mrb[0].mxu0
  %v173 = vpop.f32.mrb[0].mxu0
  %v174 = vadd.f32 0.0, %v173
  %v175 = vpop.f32.mrb[0].mxu0
  %176 = vmatprep.mubr.bf16.mxu0 0
  %177 = vmatmul.mubr.bf16.gmra.mrb[0].mxu0 %v101
  %v178 = vpop.f32.mrb[0].mxu0
  %v179 = vadd.f32 0.0, %v178
  %v180 = vpop.f32.mrb[0].mxu0
  %v181 = vpop.f32.mrb[0].mxu0
  %v182 = vadd.f32 0.0, %v181
  %v183 = vpop.f32.mrb[0].mxu0
  %184 = vmatprep.mubr.bf16.mxu0 0
  %185 = vmatmul.mubr.bf16.gmra.mrb[0].mxu0 %v104
  %v186 = vpop.f32.mrb[0].mxu0
  %v187 = vadd.f32 0.0, %v186
  %v188 = vpop.f32.mrb[0].mxu0
  %v189 = vpop.f32.mrb[0].mxu0
  %v190 = vadd.f32 0.0, %v189
  %v191 = vpop.f32.mrb[0].mxu0
  %192 = vmatprep.mubr.bf16.mxu0 0
  %193 = vmatmul.mubr.bf16.gmra.mrb[0].mxu0 %v107
  %v194 = vpop.f32.mrb[0].mxu0
  %v195 = vadd.f32 0.0, %v194
  %v196 = vpop.f32.mrb[0].mxu0
  %v197 = vpop.f32.mrb[0].mxu0
  %v198 = vadd.f32 0.0, %v197
  %v199 = vpop.f32.mrb[0].mxu0
  %200 = vmatprep.mubr.bf16.mxu0 0
  %201 = vmatmul.mubr.bf16.gmra.mrb[0].mxu0 %v110
  %v202 = vpop.f32.mrb[0].mxu0
  %v203 = vadd.f32 0.0, %v202
  %v204 = vpop.f32.mrb[0].mxu0
  %v205 = vpop.f32.mrb[0].mxu0
  %v206 = vadd.f32 0.0, %v205
  %v207 = vpop.f32.mrb[0].mxu0
  %208 = vdwg.mxu0
  %s209 = scalar_lea.vmem %s1, 16
  %v210 = vld [vmem:[%s209] sm:$0xf]
  %v211 = vld [vmem:[%s209 + $0x4] sm:$0xf]
  %v212 = vld [vmem:[%s209 + $0x8] sm:$0xf]
  %v213 = vld [vmem:[%s209 + $0xc] sm:$0xf]
  %v218 = vunpack.c.l.b16 %v210
  %v219 = vunpack.c.l.b16 %v211
  %v220 = vunpack.c.l.b16 %v212
  %v221 = vunpack.c.l.b16 %v213
  %v222 = vpack.c.b16 %v219, %v218
  %v223 = vpack.c.b16 %v221, %v220
  %226 = vmatprep.subr.bf16.mxu0 0
  %227 = vmatpush1.bf16.msra.mxu0 %v222
  %228 = vmatprep.subr.bf16.mxu0 0
  %229 = vmatpush1.bf16.msra.mxu0 %v223
  %230 = vmatprep.subr.bf16.mxu0 0
  %231 = vmatpush1.bf16.msra.mxu0 0
  %232 = vmatprep.subr.bf16.mxu0 0
  %233 = vmatpush1.bf16.msra.mxu0 0
  %234 = vmatprep.subr.bf16.mxu0 0
  %235 = vmatpush1.bf16.msra.mxu0 0
  %236 = vmatprep.subr.bf16.mxu0 0
  %237 = vmatpush1.bf16.msra.mxu0 0
  %238 = vmatprep.subr.bf16.mxu0 0
  %239 = vmatpush1.bf16.msra.mxu0 0
  %240 = vmatprep.subr.bf16.mxu0 0
  %241 = vmatpush1.bf16.msra.mxu0 0
  %242 = vmatprep.subr.bf16.mxu0 0
  %243 = vmatpush1.bf16.msra.mxu0 0
  %244 = vmatprep.subr.bf16.mxu0 0
  %245 = vmatpush1.bf16.msra.mxu0 0
  %246 = vmatprep.subr.bf16.mxu0 0
  %247 = vmatpush1.bf16.msra.mxu0 0
  %248 = vmatprep.subr.bf16.mxu0 0
  %249 = vmatpush1.bf16.msra.mxu0 0
  %250 = vmatprep.subr.bf16.mxu0 0
  %251 = vmatpush1.bf16.msra.mxu0 0
  %252 = vmatprep.subr.bf16.mxu0 0
  %253 = vmatpush1.bf16.msra.mxu0 0
  %254 = vmatprep.subr.bf16.mxu0 0
  %255 = vmatpush1.bf16.msra.mxu0 0
  %256 = vmatprep.subr.bf16.mxu0 0
  %257 = vmatpush1.bf16.msra.mxu0 0
  %258 = vmatprep.mubr.bf16.mxu0 0
  %259 = vmatmul.mubr.bf16.gmra.mrb[0].mxu0 %v89
  %v260 = vpop.f32.mrb[0].mxu0
  %v261 = vadd.f32 0.0, %v260
  %v262 = vpop.f32.mrb[0].mxu0
  %v263 = vpop.f32.mrb[0].mxu0
  %v264 = vadd.f32 0.0, %v263
  %v265 = vpop.f32.mrb[0].mxu0
  %266 = vmatprep.mubr.bf16.mxu0 0
  %267 = vmatmul.mubr.bf16.gmra.mrb[0].mxu0 %v92
  %v268 = vpop.f32.mrb[0].mxu0
  %v269 = vadd.f32 0.0, %v268
  %v270 = vpop.f32.mrb[0].mxu0
  %v271 = vpop.f32.mrb[0].mxu0
  %v272 = vadd.f32 0.0, %v271
  %v273 = vpop.f32.mrb[0].mxu0
  %274 = vmatprep.mubr.bf16.mxu0 0
  %275 = vmatmul.mubr.bf16.gmra.mrb[0].mxu0 %v95
  %v276 = vpop.f32.mrb[0].mxu0
  %v277 = vadd.f32 0.0, %v276
  %v278 = vpop.f32.mrb[0].mxu0
  %v279 = vpop.f32.mrb[0].mxu0
  %v280 = vadd.f32 0.0, %v279
  %v281 = vpop.f32.mrb[0].mxu0
  %282 = vmatprep.mubr.bf16.mxu0 0
  %283 = vmatmul.mubr.bf16.gmra.mrb[0].mxu0 %v98
  %v284 = vpop.f32.mrb[0].mxu0
  %v285 = vadd.f32 0.0, %v284
  %v286 = vpop.f32.mrb[0].mxu0
  %v287 = vpop.f32.mrb[0].mxu0
  %v288 = vadd.f32 0.0, %v287
  %v289 = vpop.f32.mrb[0].mxu0
  %290 = vmatprep.mubr.bf16.mxu0 0
  %291 = vmatmul.mubr.bf16.gmra.mrb[0].mxu0 %v101
  %v292 = vpop.f32.mrb[0].mxu0
  %v293 = vadd.f32 0.0, %v292
  %v294 = vpop.f32.mrb[0].mxu0
  %v295 = vpop.f32.mrb[0].mxu0
  %v296 = vadd.f32 0.0, %v295
  %v297 = vpop.f32.mrb[0].mxu0
  %298 = vmatprep.mubr.bf16.mxu0 0
  %299 = vmatmul.mubr.bf16.gmra.mrb[0].mxu0 %v104
  %v300 = vpop.f32.mrb[0].mxu0
  %v301 = vadd.f32 0.0, %v300
  %v302 = vpop.f32.mrb[0].mxu0
  %v303 = vpop.f32.mrb[0].mxu0
  %v304 = vadd.f32 0.0, %v303
  %v305 = vpop.f32.mrb[0].mxu0
  %306 = vmatprep.mubr.bf16.mxu0 0
  %307 = vmatmul.mubr.bf16.gmra.mrb[0].mxu0 %v107
  %v308 = vpop.f32.mrb[0].mxu0
  %v309 = vadd.f32 0.0, %v308
  %v310 = vpop.f32.mrb[0].mxu0
  %v311 = vpop.f32.mrb[0].mxu0
  %v312 = vadd.f32 0.0, %v311
  %v313 = vpop.f32.mrb[0].mxu0
  %314 = vmatprep.mubr.bf16.mxu0 0
  %315 = vmatmul.mubr.bf16.gmra.mrb[0].mxu0 %v110
  %v316 = vpop.f32.mrb[0].mxu0
  %v317 = vadd.f32 0.0, %v316
  %v318 = vpop.f32.mrb[0].mxu0
  %v319 = vpop.f32.mrb[0].mxu0
  %v320 = vadd.f32 0.0, %v319
  %v321 = vpop.f32.mrb[0].mxu0
  %322 = vdwg.mxu0
  %vm339 = vcmask 1046528
  %v340 = vrot.slane %v261, 1
  %v341 = vrot.slane %v264, 1
  %v342 = vsel %vm339, %v340, %v341
  %v343 = vrot.slane %v269, 1
  %v344 = vrot.slane %v272, 1
  %v345 = vsel %vm339, %v343, %v344
  %v346 = vrot.slane %v277, 1
  %v347 = vrot.slane %v280, 1
  %v348 = vsel %vm339, %v346, %v347
  %v349 = vrot.slane %v285, 1
  %v350 = vrot.slane %v288, 1
  %v351 = vsel %vm339, %v349, %v350
  %v352 = vrot.slane %v293, 1
  %v353 = vrot.slane %v296, 1
  %v354 = vsel %vm339, %v352, %v353
  %v355 = vrot.slane %v301, 1
  %v356 = vrot.slane %v304, 1
  %v357 = vsel %vm339, %v355, %v356
  %v358 = vrot.slane %v309, 1
  %v359 = vrot.slane %v312, 1
  %v360 = vsel %vm339, %v358, %v359
  %v361 = vrot.slane %v317, 1
  %v362 = vrot.slane %v320, 1
  %v363 = vsel %vm339, %v361, %v362
  %v380 = vadd.f32 %v147, %v342
  %v381 = vadd.f32 %v150, %v341
  %v382 = vadd.f32 %v155, %v345
  %v383 = vadd.f32 %v158, %v344
  %v384 = vadd.f32 %v163, %v348
  %v385 = vadd.f32 %v166, %v347
  %v386 = vadd.f32 %v171, %v351
  %v387 = vadd.f32 %v174, %v350
  %v388 = vadd.f32 %v179, %v354
  %v389 = vadd.f32 %v182, %v353
  %v390 = vadd.f32 %v187, %v357
  %v391 = vadd.f32 %v190, %v356
  %v392 = vadd.f32 %v195, %v360
  %v393 = vadd.f32 %v198, %v359
  %v394 = vadd.f32 %v203, %v363
  %v395 = vadd.f32 %v206, %v362
  %s396 = scalar_lea.vmem %s1, 32
  %v397 = vld [vmem:[%s396] sm:$0xf]
  %v398 = vld [vmem:[%s396 + $0x4] sm:$0xf]
  %v399 = vld [vmem:[%s396 + $0x8] sm:$0xf]
  %v400 = vld [vmem:[%s396 + $0xc] sm:$0xf]
  %v405 = vunpack.c.l.b16 %v397
  %v406 = vunpack.c.l.b16 %v398
  %v407 = vunpack.c.l.b16 %v399
  %v408 = vunpack.c.l.b16 %v400
  %v409 = vpack.c.b16 %v406, %v405
  %v410 = vpack.c.b16 %v408, %v407
  %413 = vmatprep.subr.bf16.mxu0 0
  %414 = vmatpush1.bf16.msra.mxu0 %v409
  %415 = vmatprep.subr.bf16.mxu0 0
  %416 = vmatpush1.bf16.msra.mxu0 %v410
  %417 = vmatprep.subr.bf16.mxu0 0
  %418 = vmatpush1.bf16.msra.mxu0 0
  %419 = vmatprep.subr.bf16.mxu0 0
  %420 = vmatpush1.bf16.msra.mxu0 0
  %421 = vmatprep.subr.bf16.mxu0 0
  %422 = vmatpush1.bf16.msra.mxu0 0
  %423 = vmatprep.subr.bf16.mxu0 0
  %424 = vmatpush1.bf16.msra.mxu0 0
  %425 = vmatprep.subr.bf16.mxu0 0
  %426 = vmatpush1.bf16.msra.mxu0 0
  %427 = vmatprep.subr.bf16.mxu0 0
  %428 = vmatpush1.bf16.msra.mxu0 0
  %429 = vmatprep.subr.bf16.mxu0 0
  %430 = vmatpush1.bf16.msra.mxu0 0
  %431 = vmatprep.subr.bf16.mxu0 0
  %432 = vmatpush1.bf16.msra.mxu0 0
  %433 = vmatprep.subr.bf16.mxu0 0
  %434 = vmatpush1.bf16.msra.mxu0 0
  %435 = vmatprep.subr.bf16.mxu0 0
  %436 = vmatpush1.bf16.msra.mxu0 0
  %437 = vmatprep.subr.bf16.mxu0 0
  %438 = vmatpush1.bf16.msra.mxu0 0
  %439 = vmatprep.subr.bf16.mxu0 0
  %440 = vmatpush1.bf16.msra.mxu0 0
  %441 = vmatprep.subr.bf16.mxu0 0
  %442 = vmatpush1.bf16.msra.mxu0 0
  %443 = vmatprep.subr.bf16.mxu0 0
  %444 = vmatpush1.bf16.msra.mxu0 0
  %445 = vmatprep.mubr.bf16.mxu0 0
  %446 = vmatmul.mubr.bf16.gmra.mrb[0].mxu0 %v89
  %v447 = vpop.f32.mrb[0].mxu0
  %v448 = vadd.f32 0.0, %v447
  %v449 = vpop.f32.mrb[0].mxu0
  %v450 = vpop.f32.mrb[0].mxu0
  %v451 = vadd.f32 0.0, %v450
  %v452 = vpop.f32.mrb[0].mxu0
  %453 = vmatprep.mubr.bf16.mxu0 0
  %454 = vmatmul.mubr.bf16.gmra.mrb[0].mxu0 %v92
  %v455 = vpop.f32.mrb[0].mxu0
  %v456 = vadd.f32 0.0, %v455
  %v457 = vpop.f32.mrb[0].mxu0
  %v458 = vpop.f32.mrb[0].mxu0
  %v459 = vadd.f32 0.0, %v458
  %v460 = vpop.f32.mrb[0].mxu0
  %461 = vmatprep.mubr.bf16.mxu0 0
  %462 = vmatmul.mubr.bf16.gmra.mrb[0].mxu0 %v95
  %v463 = vpop.f32.mrb[0].mxu0
  %v464 = vadd.f32 0.0, %v463
  %v465 = vpop.f32.mrb[0].mxu0
  %v466 = vpop.f32.mrb[0].mxu0
  %v467 = vadd.f32 0.0, %v466
  %v468 = vpop.f32.mrb[0].mxu0
  %469 = vmatprep.mubr.bf16.mxu0 0
  %470 = vmatmul.mubr.bf16.gmra.mrb[0].mxu0 %v98
  %v471 = vpop.f32.mrb[0].mxu0
  %v472 = vadd.f32 0.0, %v471
  %v473 = vpop.f32.mrb[0].mxu0
  %v474 = vpop.f32.mrb[0].mxu0
  %v475 = vadd.f32 0.0, %v474
  %v476 = vpop.f32.mrb[0].mxu0
  %477 = vmatprep.mubr.bf16.mxu0 0
  %478 = vmatmul.mubr.bf16.gmra.mrb[0].mxu0 %v101
  %v479 = vpop.f32.mrb[0].mxu0
  %v480 = vadd.f32 0.0, %v479
  %v481 = vpop.f32.mrb[0].mxu0
  %v482 = vpop.f32.mrb[0].mxu0
  %v483 = vadd.f32 0.0, %v482
  %v484 = vpop.f32.mrb[0].mxu0
  %485 = vmatprep.mubr.bf16.mxu0 0
  %486 = vmatmul.mubr.bf16.gmra.mrb[0].mxu0 %v104
  %v487 = vpop.f32.mrb[0].mxu0
  %v488 = vadd.f32 0.0, %v487
  %v489 = vpop.f32.mrb[0].mxu0
  %v490 = vpop.f32.mrb[0].mxu0
  %v491 = vadd.f32 0.0, %v490
  %v492 = vpop.f32.mrb[0].mxu0
  %493 = vmatprep.mubr.bf16.mxu0 0
  %494 = vmatmul.mubr.bf16.gmra.mrb[0].mxu0 %v107
  %v495 = vpop.f32.mrb[0].mxu0
  %v496 = vadd.f32 0.0, %v495
  %v497 = vpop.f32.mrb[0].mxu0
  %v498 = vpop.f32.mrb[0].mxu0
  %v499 = vadd.f32 0.0, %v498
  %v500 = vpop.f32.mrb[0].mxu0
  %501 = vmatprep.mubr.bf16.mxu0 0
  %502 = vmatmul.mubr.bf16.gmra.mrb[0].mxu0 %v110
  %v503 = vpop.f32.mrb[0].mxu0
  %v504 = vadd.f32 0.0, %v503
  %v505 = vpop.f32.mrb[0].mxu0
  %v506 = vpop.f32.mrb[0].mxu0
  %v507 = vadd.f32 0.0, %v506
  %v508 = vpop.f32.mrb[0].mxu0
  %509 = vdwg.mxu0
  %vm526 = vcmask 1045504
  %v527 = vrot.slane %v448, 2
  %v528 = vrot.slane %v451, 2
  %v529 = vsel %vm526, %v527, %v528
  %v530 = vrot.slane %v456, 2
  %v531 = vrot.slane %v459, 2
  %v532 = vsel %vm526, %v530, %v531
  %v533 = vrot.slane %v464, 2
  %v534 = vrot.slane %v467, 2
  %v535 = vsel %vm526, %v533, %v534
  %v536 = vrot.slane %v472, 2
  %v537 = vrot.slane %v475, 2
  %v538 = vsel %vm526, %v536, %v537
  %v539 = vrot.slane %v480, 2
  %v540 = vrot.slane %v483, 2
  %v541 = vsel %vm526, %v539, %v540
  %v542 = vrot.slane %v488, 2
  %v543 = vrot.slane %v491, 2
  %v544 = vsel %vm526, %v542, %v543
  %v545 = vrot.slane %v496, 2
  %v546 = vrot.slane %v499, 2
  %v547 = vsel %vm526, %v545, %v546
  %v548 = vrot.slane %v504, 2
  %v549 = vrot.slane %v507, 2
  %v550 = vsel %vm526, %v548, %v549
  %v567 = vadd.f32 %v380, %v529
  %v568 = vadd.f32 %v381, %v528
  %v569 = vadd.f32 %v382, %v532
  %v570 = vadd.f32 %v383, %v531
  %v571 = vadd.f32 %v384, %v535
  %v572 = vadd.f32 %v385, %v534
  %v573 = vadd.f32 %v386, %v538
  %v574 = vadd.f32 %v387, %v537
  %v575 = vadd.f32 %v388, %v541
  %v576 = vadd.f32 %v389, %v540
  %v577 = vadd.f32 %v390, %v544
  %v578 = vadd.f32 %v391, %v543
  %v579 = vadd.f32 %v392, %v547
  %v580 = vadd.f32 %v393, %v546
  %v581 = vadd.f32 %v394, %v550
  %v582 = vadd.f32 %v395, %v549
  %v583 = vsel %vm526, %v568, -inf
  %v584 = vmax.f32 %v567, %v583
  %v585 = vrot.slane %v584, 4
  %v586 = vmax.f32 %v584, %v585
  %v587 = vrot.slane %v586, 2
  %v588 = vmax.f32 %v586, %v587
  %v589 = vrot.slane %v588, 1
  %v590 = vmax.f32 %v588, %v589
  %v591 = vsel %vm526, %v570, -inf
  %v592 = vmax.f32 %v569, %v591
  %v593 = vrot.slane %v592, 4
  %v594 = vmax.f32 %v592, %v593
  %v595 = vrot.slane %v594, 2
  %v596 = vmax.f32 %v594, %v595
  %v597 = vrot.slane %v596, 1
  %v598 = vmax.f32 %v596, %v597
  %v599 = vsel %vm526, %v572, -inf
  %v600 = vmax.f32 %v571, %v599
  %v601 = vrot.slane %v600, 4
  %v602 = vmax.f32 %v600, %v601
  %v603 = vrot.slane %v602, 2
  %v604 = vmax.f32 %v602, %v603
  %v605 = vrot.slane %v604, 1
  %v606 = vmax.f32 %v604, %v605
  %v607 = vsel %vm526, %v574, -inf
  %v608 = vmax.f32 %v573, %v607
  %v609 = vrot.slane %v608, 4
  %v610 = vmax.f32 %v608, %v609
  %v611 = vrot.slane %v610, 2
  %v612 = vmax.f32 %v610, %v611
  %v613 = vrot.slane %v612, 1
  %v614 = vmax.f32 %v612, %v613
  %v615 = vsel %vm526, %v576, -inf
  %v616 = vmax.f32 %v575, %v615
  %v617 = vrot.slane %v616, 4
  %v618 = vmax.f32 %v616, %v617
  %v619 = vrot.slane %v618, 2
  %v620 = vmax.f32 %v618, %v619
  %v621 = vrot.slane %v620, 1
  %v622 = vmax.f32 %v620, %v621
  %v623 = vsel %vm526, %v578, -inf
  %v624 = vmax.f32 %v577, %v623
  %v625 = vrot.slane %v624, 4
  %v626 = vmax.f32 %v624, %v625
  %v627 = vrot.slane %v626, 2
  %v628 = vmax.f32 %v626, %v627
  %v629 = vrot.slane %v628, 1
  %v630 = vmax.f32 %v628, %v629
  %v631 = vsel %vm526, %v580, -inf
  %v632 = vmax.f32 %v579, %v631
  %v633 = vrot.slane %v632, 4
  %v634 = vmax.f32 %v632, %v633
  %v635 = vrot.slane %v634, 2
  %v636 = vmax.f32 %v634, %v635
  %v637 = vrot.slane %v636, 1
  %v638 = vmax.f32 %v636, %v637
  %v639 = vsel %vm526, %v582, -inf
  %v640 = vmax.f32 %v581, %v639
  %v641 = vrot.slane %v640, 4
  %v642 = vmax.f32 %v640, %v641
  %v643 = vrot.slane %v642, 2
  %v644 = vmax.f32 %v642, %v643
  %v645 = vrot.slane %v644, 1
  %v646 = vmax.f32 %v644, %v645
  %v647 = vld [vmem:[%s2] sm:$0x1]
  %v649 = vlaneseq
  %v650 = vshrl.u32 %v649, 7
  %v651 = vsub.s32 0, %v650
  %v652 = vrot.slane %v647, %v651
  %v654 = vadd.f32 %v590, %v652
  %v655 = vadd.f32 %v598, %v652
  %v656 = vadd.f32 %v606, %v652
  %v657 = vadd.f32 %v614, %v652
  %v658 = vadd.f32 %v622, %v652
  %v659 = vadd.f32 %v630, %v652
  %v660 = vadd.f32 %v638, %v652
  %v661 = vadd.f32 %v646, %v652
  %v662 = vmax.f32 %v654, 0.0
  %v663 = vmax.f32 %v655, 0.0
  %v664 = vmax.f32 %v656, 0.0
  %v665 = vmax.f32 %v657, 0.0
  %v666 = vmax.f32 %v658, 0.0
  %v667 = vmax.f32 %v659, 0.0
  %v668 = vmax.f32 %v660, 0.0
  %v669 = vmax.f32 %v661, 0.0
  %v678 = vrot.slane %v663, 7
  %vm679 = vcmask 1041409
  %v680 = vsel %vm679, %v678, %v662
  %v681 = vrot.slane %v664, 6
  %vm682 = vcmask 1042434
  %v683 = vsel %vm682, %v681, %v680
  %v684 = vrot.slane %v665, 5
  %vm685 = vcmask 1043459
  %v686 = vsel %vm685, %v684, %v683
  %v687 = vrot.slane %v666, 4
  %vm688 = vcmask 1044484
  %v689 = vsel %vm688, %v687, %v686
  %v690 = vrot.slane %v667, 3
  %vm691 = vcmask 1045509
  %v692 = vsel %vm691, %v690, %v689
  %v693 = vrot.slane %v668, 2
  %vm694 = vcmask 1046534
  %v695 = vsel %vm694, %v693, %v692
  %v696 = vrot.slane %v669, 1
  %vm697 = vcmask 1047559
  %v698 = vsel %vm697, %v696, %v695
  %700 = vst [vmem:[%s3] sm:$0xff] %v698
  // Predicated region
  $region14: #{_lambda_.1} parent=0 // pred_check
    _
  $region15: #{_lambda_.1} parent=0 // pred_check_branch
    %702 = sbr.rel (0) target = $region17
  $region16: #{_lambda_.1} parent=0 // pred_region
    _
  $region17: #{_lambda_.1} parent=0 // pred_fallthru
    _
  // Predicated region
  $region18: #{_lambda_.1} parent=0 // pred_check
    _
  $region19: #{_lambda_.1} parent=0 // pred_check_branch
    %704 = sbr.rel (0) target = $region21
  $region20: #{_lambda_.1} parent=0 // pred_region
    _
  $region21: #{_lambda_.1} parent=0 // pred_fallthru
    _

</llo_original>
